<compile_context>
chip_gen: v6e
topology: v6e:2x2x1
jax: 0.10.0
libtpu: 0.0.40
codegen_flags: <defaults>
</compile_context>

<pallas_src>
import jax
import jax.numpy as jnp
from jax.experimental import pallas as pl
from jax.experimental.pallas import tpu as pltpu


def _round_up(x, m):
    return ((x + m - 1) // m) * m


# --------------------------------- kernel ---------------------------------------


def _gru_history_kernel(x_ref, h0_ref, mask_ref, wi_ref, wh_ref, b_rzn_ref, bhn_ref,
                        out_ref):
    """One (batch-tile, time-step) grid cell of the masked-GRU recurrence.

    The hidden state is carried across the time ("arbitrary") grid axis in the
    VMEM-resident output block; it is initialised from h0_ref at t == 0.
    """
    t = pl.program_id(1)

    @pl.when(t == 0)
    def _():
        out_ref[...] = h0_ref[...]           # load initial hidden state once per tile

    x = x_ref[0]                             # (TB, E)  matmul dtype (f32 or bf16)
    h = out_ref[...]                         # (TB, E)  f32 carry (exact keep-path)
    keep = mask_ref[0] != 0                  # (TB, 1)  True == keep old hidden state

    E = h.shape[-1]

    # Two fused gate-stacked matmuls: (TB,E) @ (E,3E) -> (TB,3E), f32 accumulation.
    xW = jnp.dot(x, wi_ref[...], preferred_element_type=jnp.float32)
    hW = jnp.dot(h.astype(wh_ref.dtype), wh_ref[...],
                 preferred_element_type=jnp.float32)

    gates = xW + b_rzn_ref[...]              # fused [bir+bhr, biz+bhz, bin] bias add

    r = jax.nn.sigmoid(gates[:, 0:E] + hW[:, 0:E])
    z = jax.nn.sigmoid(gates[:, E:2 * E] + hW[:, E:2 * E])
    n = jnp.tanh(gates[:, 2 * E:3 * E] + r * (hW[:, 2 * E:3 * E] + bhn_ref[...]))

    h_new = n + z * (h - n)                  # == (1-z)*n + z*h, one fewer VPU op
    out_ref[...] = jnp.where(keep, h, h_new)


# --------------------------------- wrappers -------------------------------------


def history_encoder_gru_sequence(prev_actions, hx, masks, fused_params, *,
                                 batch_tile=512):
    """Run T masked-GRU steps in ONE kernel launch; returns the final hidden state.

    prev_actions: (T, B, E) f32
    hx:           (B, E)    f32     initial hidden state
    masks:        (T, B, 1) bool    True == NO_OP (keep the old hidden state that step)
    fused_params: dict from fuse_params(): w_i/w_h (Ep,3Ep) in the matmul dtype,
                  b_rzn (1,3Ep) f32, b_hn (1,Ep) f32, with Ep = round_up(E, 128).
    """
    T, B, E = prev_actions.shape
    assert hx.shape == (B, E) and masks.shape[:2] == (T, B)

    w_i, w_h = fused_params["w_i"], fused_params["w_h"]
    b_rzn, b_hn = fused_params["b_rzn"], fused_params["b_hn"]
    E_pad = w_i.shape[0]
    assert E_pad % 128 == 0 and E <= E_pad and w_i.shape == (E_pad, 3 * E_pad)
    mm_dtype = w_i.dtype                       # weights pre-cast once in fuse_params
    mm_bytes = jnp.dtype(mm_dtype).itemsize

    # ---- batch tiling: sublane-aligned tile, pad B (no grid-collapsing fallback) ----
    row_align = 16 if mm_bytes < 4 else 8
    TB = _round_up(min(batch_tile, _round_up(B, row_align)), row_align)
    B_pad = _round_up(B, TB)
    nb = B_pad // TB        # NOTE(v7x): keep nb >= 2 (and even) so both TCs get work

    # ---- pad activations: padded rows use mask=keep; padded E columns stay 0 --------
    x = jnp.pad(prev_actions.astype(mm_dtype),
                ((0, 0), (0, B_pad - B), (0, E_pad - E)))
    h0 = jnp.pad(hx.astype(jnp.float32), ((0, B_pad - B), (0, E_pad - E)))
    mask_i = jnp.pad(masks.astype(jnp.int32), ((0, 0), (0, B_pad - B), (0, 0)),
                     constant_values=1)

    # ---- VMEM budget: single-buffered weights + double-buffered streams + headroom --
    weight_bytes = 2 * E_pad * 3 * E_pad * mm_bytes + 4 * E_pad * 4
    stream_bytes = 2 * (TB * E_pad * mm_bytes + TB * 4 + 2 * TB * E_pad * 4)
    interm_bytes = 6 * TB * 3 * E_pad * 4
    vmem_limit = int(min(max(weight_bytes + stream_bytes + interm_bytes + (4 << 20),
                             16 << 20), 64 << 20))

    def resident(shape):                       # VMEM-resident, single-buffered block
        return pl.BlockSpec(shape, lambda b, t: (0,) * len(shape),
                            pipeline_mode=pl.Buffered(1))

    out = pl.pallas_call(
        _gru_history_kernel,
        out_shape=jax.ShapeDtypeStruct((B_pad, E_pad), jnp.float32),
        grid=(nb, T),
        in_specs=[
            pl.BlockSpec((1, TB, E_pad), lambda b, t: (t, b, 0)),   # x_t     (streamed)
            pl.BlockSpec((TB, E_pad), lambda b, t: (b, 0)),         # h0      (per tile)
            pl.BlockSpec((1, TB, 1), lambda b, t: (t, b, 0)),       # mask_t  (streamed)
            resident((E_pad, 3 * E_pad)),                           # w_i   VMEM-resident
            resident((E_pad, 3 * E_pad)),                           # w_h   VMEM-resident
            resident((1, 3 * E_pad)),                               # b_rzn VMEM-resident
            resident((1, E_pad)),                                   # b_hn  VMEM-resident
        ],
        out_specs=pl.BlockSpec((TB, E_pad), lambda b, t: (b, 0)),   # hidden-state carry
        input_output_aliases={1: 0},           # hx updated "in place" (if donated)
        compiler_params=pltpu.CompilerParams(
            dimension_semantics=("parallel", "arbitrary"),          # batch // cores, time serial
            vmem_limit_bytes=vmem_limit,
        ),
    )(x, h0, mask_i, w_i, w_h, b_rzn, b_hn)

    return out[:B, :E]


def history_encoder_gru(prev_action, hx, mask_bool, fused_params, *, batch_tile=512):
    """One HistoryEncoderGRU.forward step (the PyTorch module's exact semantics)."""
    return history_encoder_gru_sequence(prev_action[None], hx, mask_bool[None],
                                        fused_params, batch_tile=batch_tile)


# --------------------------- parameters & reference ------------------------------


def init_raw_params(key, embsize):
    """Per-gate GRUCell-like init: uniform(-1/sqrt(H), 1/sqrt(H)), weights (in, out)."""
    bound = 1.0 / jnp.sqrt(jnp.float32(embsize))
    names = ["wir", "wiz", "win", "whr", "whz", "whn",
             "bir", "biz", "bin", "bhr", "bhz", "bhn"]
    keys = jax.random.split(key, len(names))
    params = {}
    for k, name in zip(keys, names):
        shape = (embsize, embsize) if name.startswith("w") else (1, embsize)
        params[name] = jax.random.uniform(k, shape, jnp.float32, -bound, bound)
    return params


def fuse_params(p, matmul_dtype=jnp.float32):
    """Gate-stack weights, pre-fuse biases, pad E to a multiple of 128 and pre-cast the
    matmul operands ONCE (no per-call astype).

    Expects per-gate weights stored (in, out) with gate order [r, z, n].
    NOTE: torch.nn.GRUCell stores weight_ih/weight_hh as (3H, in); transpose and split
    them into wir/wiz/win (resp. whr/whz/whn) before calling this.
    """
    E = p["wir"].shape[0]
    E_pad = _round_up(E, 128)
    pw = lambda w: jnp.pad(w, ((0, E_pad - E), (0, E_pad - E)))
    pb = lambda b: jnp.pad(b, ((0, 0), (0, E_pad - E)))
    return {
        "w_i": jnp.concatenate([pw(p["wir"]), pw(p["wiz"]), pw(p["win"])],
                               axis=1).astype(matmul_dtype),                   # (Ep,3Ep)
        "w_h": jnp.concatenate([pw(p["whr"]), pw(p["whz"]), pw(p["whn"])],
                               axis=1).astype(matmul_dtype),                   # (Ep,3Ep)
        "b_rzn": jnp.concatenate([pb(p["bir"] + p["bhr"]), pb(p["biz"] + p["bhz"]),
                                  pb(p["bin"])], axis=1).astype(jnp.float32),  # (1,3Ep)
        "b_hn": pb(p["bhn"]).astype(jnp.float32),                              # (1,Ep)
    }


def reference_forward(prev_action, hx, mask_bool, p):
    """Pure-JAX reference mirroring torch.nn.GRUCell + torch.where (one step)."""
    r = jax.nn.sigmoid(prev_action @ p["wir"] + p["bir"] + hx @ p["whr"] + p["bhr"])
    z = jax.nn.sigmoid(prev_action @ p["wiz"] + p["biz"] + hx @ p["whz"] + p["bhz"])
    n = jnp.tanh(prev_action @ p["win"] + p["bin"] + r * (hx @ p["whn"] + p["bhn"]))
    h_new = (1.0 - z) * n + z * hx
    return jnp.where(mask_bool, hx, h_new)


def reference_sequence(prev_actions, hx, masks, p):
    def step(h, xm):
        x_t, m_t = xm
        return reference_forward(x_t, h, m_t, p), None
    h_final, _ = jax.lax.scan(step, hx, (prev_actions, masks))
    return h_final


# ------------------------------------ demo ---------------------------------------

if __name__ == "__main__":
    T, batch, embsize = 4, 8, 128

    key = jax.random.PRNGKey(0)
    k_param, k_x, k_h, k_m, k_alt = jax.random.split(key, 5)

    raw_params = init_raw_params(k_param, embsize)
    fused_f32 = fuse_params(raw_params, jnp.float32)
    fused_bf16 = fuse_params(raw_params, jnp.bfloat16)   # pre-cast once (no per-call pass)

    prev_actions = jax.random.normal(k_x, (T, batch, embsize), jnp.float32)
    hx = jax.random.normal(k_h, (batch, embsize), jnp.float32)
    masks = jax.random.bernoulli(k_m, 0.5, (T, batch, 1))   # True == NO_OP (keep old hx)

    # 1) single step == the module's forward() — f32 matmul path, exact vs reference.
    ref1 = reference_forward(prev_actions[0], hx, masks[0], raw_params)
    out1 = jax.block_until_ready(
        history_encoder_gru(prev_actions[0], hx, masks[0], fused_f32))
    assert out1.shape == (batch, embsize)
    assert jnp.allclose(out1, ref1, atol=1e-5, rtol=1e-5), "single-step mismatch"

    # 2) full T-step recurrence in one kernel launch (weights DMA'd once per sequence).
    ref_seq = reference_sequence(prev_actions, hx, masks, raw_params)
    out_seq = jax.block_until_ready(
        history_encoder_gru_sequence(prev_actions, hx, masks, fused_f32))
    assert jnp.allclose(out_seq, ref_seq, atol=1e-4, rtol=1e-4), "sequence mismatch"

    # 3) bf16 weight path (native MXU datapath; gate math, carry and blend stay f32).
    out_bf16 = jax.block_until_ready(
        history_encoder_gru_sequence(prev_actions, hx, masks, fused_bf16))
    assert jnp.allclose(out_bf16, ref_seq, atol=1e-1, rtol=1e-1), "bf16 sequence mismatch"

    # 4) odd shapes exercise the batch/E padding path (B=5 -> 8 rows, E=96 -> 128 lanes).
    emb2, b2 = 96, 5
    raw2 = init_raw_params(k_alt, emb2)
    fused2 = fuse_params(raw2)
    k2a, k2b, k2c = jax.random.split(k_alt, 3)
    x2 = jax.random.normal(k2a, (T, b2, emb2), jnp.float32)
    h2 = jax.random.normal(k2b, (b2, emb2), jnp.float32)
    m2 = jax.random.bernoulli(k2c, 0.5, (T, b2, 1))
    ref2 = reference_sequence(x2, h2, m2, raw2)
    out2 = jax.block_until_ready(history_encoder_gru_sequence(x2, h2, m2, fused2))
    assert out2.shape == (b2, emb2)
    assert jnp.allclose(out2, ref2, atol=1e-4, rtol=1e-4), "padded-shape mismatch"

    print("KERNEL_OK")
</pallas_src>

<mosaic_0001>
module attributes {stable_mosaic.version = 11 : i64} {
  func.func @_gru_history_kernel(%arg0: i32, %arg1: i32, %arg2: memref<1x8x128xf32, #tpu.memory_space<vmem>>, %arg3: memref<8x128xf32, #tpu.memory_space<vmem>>, %arg4: memref<1x8x1xi32, #tpu.memory_space<vmem>>, %arg5: memref<128x384xf32, #tpu.memory_space<vmem>>, %arg6: memref<128x384xf32, #tpu.memory_space<vmem>>, %arg7: memref<1x384xf32, #tpu.memory_space<vmem>>, %arg8: memref<1x128xf32, #tpu.memory_space<vmem>>, %arg9: memref<8x128xf32, #tpu.memory_space<vmem>>) attributes {dimension_semantics = [#tpu.dimension_semantics<parallel>, #tpu.dimension_semantics<arbitrary>], iteration_bounds = array<i64: 1, 1>, scalar_prefetch = 0 : i64, scratch_operands = 0 : i64, tpu.core_type = #tpu.core_type<tc>, window_params = [{transform_indices = @transform_0, window_bounds = array<i64: 1, 8, 128>}, {transform_indices = @transform_1, window_bounds = array<i64: 8, 128>}, {transform_indices = @transform_2, window_bounds = array<i64: 1, 8, 1>}, {pipeline_mode = #tpu.pipeline_mode<synchronous>, transform_indices = @transform_3, window_bounds = array<i64: 128, 384>}, {pipeline_mode = #tpu.pipeline_mode<synchronous>, transform_indices = @transform_4, window_bounds = array<i64: 128, 384>}, {pipeline_mode = #tpu.pipeline_mode<synchronous>, transform_indices = @transform_5, window_bounds = array<i64: 1, 384>}, {pipeline_mode = #tpu.pipeline_mode<synchronous>, transform_indices = @transform_6, window_bounds = array<i64: 1, 128>}, {transform_indices = @transform_7, window_bounds = array<i64: 8, 128>}]} {
    %c0_i32 = arith.constant 0 : i32
    %0 = arith.cmpi eq, %arg1, %c0_i32 : i32
    %1 = arith.extui %0 : i1 to i32
    %c0_i32_0 = arith.constant 0 : i32
    %2 = arith.cmpi ne, %1, %c0_i32_0 : i32
    scf.if %2 {
      %c0_22 = arith.constant 0 : index
      %c0_23 = arith.constant 0 : index
      %48 = vector.load %arg3[%c0_22, %c0_23] : memref<8x128xf32, #tpu.memory_space<vmem>>, vector<8x128xf32>
      %c0_24 = arith.constant 0 : index
      %c0_25 = arith.constant 0 : index
      %49 = vector.load %arg9[%c0_24, %c0_25] : memref<8x128xf32, #tpu.memory_space<vmem>>, vector<8x128xf32>
      tpu.vector_store %arg9[%c0_24, %c0_25], %48 {strides = array<i32>} : memref<8x128xf32, #tpu.memory_space<vmem>>, vector<8x128xf32>,
    } else {
    }
    %c0 = arith.constant 0 : index
    %c0_1 = arith.constant 0 : index
    %c0_2 = arith.constant 0 : index
    %3 = vector.load %arg2[%c0, %c0_1, %c0_2] : memref<1x8x128xf32, #tpu.memory_space<vmem>>, vector<1x8x128xf32>
    %4 = vector.shape_cast %3 : vector<1x8x128xf32> to vector<8x128xf32>
    %c0_3 = arith.constant 0 : index
    %c0_4 = arith.constant 0 : index
    %5 = vector.load %arg9[%c0_3, %c0_4] : memref<8x128xf32, #tpu.memory_space<vmem>>, vector<8x128xf32>
    %c0_5 = arith.constant 0 : index
    %c0_6 = arith.constant 0 : index
    %c0_7 = arith.constant 0 : index
    %6 = vector.load %arg4[%c0_5, %c0_6, %c0_7] : memref<1x8x1xi32, #tpu.memory_space<vmem>>, vector<1x8x1xi32>
    %7 = vector.shape_cast %6 : vector<1x8x1xi32> to vector<8x1xi32>
    %c0_i32_8 = arith.constant 0 : i32
    %8 = vector.broadcast %c0_i32_8 : i32 to vector<8x1xi32>
    %9 = arith.cmpi ne, %7, %8 : vector<8x1xi32>
    %c0_9 = arith.constant 0 : index
    %c0_10 = arith.constant 0 : index
    %10 = vector.load %arg5[%c0_9, %c0_10] : memref<128x384xf32, #tpu.memory_space<vmem>>, vector<128x384xf32>
    %cst = arith.constant dense<0.000000e+00> : vector<8x384xf32>
    %11 = tpu.matmul %4, %10, %cst {dimension_numbers = #tpu.dot_dimension_numbers<[1], [0], [0], [1], [0, 0, 1, 1], [], []>} : vector<8x128xf32>, vector<128x384xf32>, vector<8x384xf32> -> vector<8x384xf32>
    %c0_11 = arith.constant 0 : index
    %c0_12 = arith.constant 0 : index
    %12 = vector.load %arg6[%c0_11, %c0_12] : memref<128x384xf32, #tpu.memory_space<vmem>>, vector<128x384xf32>
    %cst_13 = arith.constant dense<0.000000e+00> : vector<8x384xf32>
    %13 = tpu.matmul %5, %12, %cst_13 {dimension_numbers = #tpu.dot_dimension_numbers<[1], [0], [0], [1], [0, 0, 1, 1], [], []>} : vector<8x128xf32>, vector<128x384xf32>, vector<8x384xf32> -> vector<8x384xf32>
    %c0_14 = arith.constant 0 : index
    %c0_15 = arith.constant 0 : index
    %14 = vector.load %arg7[%c0_14, %c0_15] : memref<1x384xf32, #tpu.memory_space<vmem>>, vector<1x384xf32>
    %15 = vector.broadcast %14 : vector<1x384xf32> to vector<8x384xf32>
    %16 = arith.addf %11, %15 : vector<8x384xf32>
    %17 = vector.extract_strided_slice %16 {offsets = [0, 0], sizes = [8, 128], strides = [1, 1]} : vector<8x384xf32> to vector<8x128xf32>
    %18 = vector.extract_strided_slice %13 {offsets = [0, 0], sizes = [8, 128], strides = [1, 1]} : vector<8x384xf32> to vector<8x128xf32>
    %19 = arith.addf %17, %18 : vector<8x128xf32>
    %20 = arith.negf %19 : vector<8x128xf32>
    %21 = math.exp %20 : vector<8x128xf32>
    %cst_16 = arith.constant 1.000000e+00 : f32
    %22 = vector.broadcast %cst_16 : f32 to vector<8x128xf32>
    %23 = arith.addf %22, %21 : vector<8x128xf32>
    %24 = arith.divf %22, %23 : vector<8x128xf32>
    %25 = vector.extract_strided_slice %16 {offsets = [0, 128], sizes = [8, 128], strides = [1, 1]} : vector<8x384xf32> to vector<8x128xf32>
    %26 = vector.extract_strided_slice %13 {offsets = [0, 128], sizes = [8, 128], strides = [1, 1]} : vector<8x384xf32> to vector<8x128xf32>
    %27 = arith.addf %25, %26 : vector<8x128xf32>
    %28 = arith.negf %27 : vector<8x128xf32>
    %29 = math.exp %28 : vector<8x128xf32>
    %cst_17 = arith.constant 1.000000e+00 : f32
    %30 = vector.broadcast %cst_17 : f32 to vector<8x128xf32>
    %31 = arith.addf %30, %29 : vector<8x128xf32>
    %32 = arith.divf %30, %31 : vector<8x128xf32>
    %33 = vector.extract_strided_slice %16 {offsets = [0, 256], sizes = [8, 128], strides = [1, 1]} : vector<8x384xf32> to vector<8x128xf32>
    %34 = vector.extract_strided_slice %13 {offsets = [0, 256], sizes = [8, 128], strides = [1, 1]} : vector<8x384xf32> to vector<8x128xf32>
    %c0_18 = arith.constant 0 : index
    %c0_19 = arith.constant 0 : index
    %35 = vector.load %arg8[%c0_18, %c0_19] : memref<1x128xf32, #tpu.memory_space<vmem>>, vector<1x128xf32>
    %36 = vector.broadcast %35 : vector<1x128xf32> to vector<8x128xf32>
    %37 = arith.addf %34, %36 : vector<8x128xf32>
    %38 = arith.mulf %24, %37 : vector<8x128xf32>
    %39 = arith.addf %33, %38 : vector<8x128xf32>
    %40 = math.tanh %39 : vector<8x128xf32>
    %41 = arith.subf %5, %40 : vector<8x128xf32>
    %42 = arith.mulf %32, %41 : vector<8x128xf32>
    %43 = arith.addf %40, %42 : vector<8x128xf32>
    %44 = vector.shape_cast %9 : vector<8x1xi1> to vector<8x1xi1>
    %45 = vector.broadcast %44 : vector<8x1xi1> to vector<8x128xi1>
    %46 = arith.select %45, %5, %43 : vector<8x128xi1>, vector<8x128xf32>
    %c0_20 = arith.constant 0 : index
    %c0_21 = arith.constant 0 : index
    %47 = vector.load %arg9[%c0_20, %c0_21] : memref<8x128xf32, #tpu.memory_space<vmem>>, vector<8x128xf32>
    tpu.vector_store %arg9[%c0_20, %c0_21], %46 {strides = array<i32>} : memref<8x128xf32, #tpu.memory_space<vmem>>, vector<8x128xf32>,
    return
  }
  func.func @transform_0(%arg0: i32, %arg1: i32) -> (i32, i32, i32) {
    %c0_i32 = arith.constant 0 : i32
    %c0_i32_0 = arith.constant 0 : i32
    return %arg1, %arg0, %c0_i32 : i32, i32, i32
  }
  func.func @transform_1(%arg0: i32, %arg1: i32) -> (i32, i32) {
    %c0_i32 = arith.constant 0 : i32
    %c0_i32_0 = arith.constant 0 : i32
    return %arg0, %c0_i32 : i32, i32
  }
  func.func @transform_2(%arg0: i32, %arg1: i32) -> (i32, i32, i32) {
    %c0_i32 = arith.constant 0 : i32
    %c0_i32_0 = arith.constant 0 : i32
    return %arg1, %arg0, %c0_i32 : i32, i32, i32
  }
  func.func @transform_3(%arg0: i32, %arg1: i32) -> (i32, i32) {
    %c0_i32 = arith.constant 0 : i32
    %c0_i32_0 = arith.constant 0 : i32
    %c0_i32_1 = arith.constant 0 : i32
    return %c0_i32, %c0_i32_0 : i32, i32
  }
  func.func @transform_4(%arg0: i32, %arg1: i32) -> (i32, i32) {
    %c0_i32 = arith.constant 0 : i32
    %c0_i32_0 = arith.constant 0 : i32
    %c0_i32_1 = arith.constant 0 : i32
    return %c0_i32, %c0_i32_0 : i32, i32
  }
  func.func @transform_5(%arg0: i32, %arg1: i32) -> (i32, i32) {
    %c0_i32 = arith.constant 0 : i32
    %c0_i32_0 = arith.constant 0 : i32
    %c0_i32_1 = arith.constant 0 : i32
    return %c0_i32, %c0_i32_0 : i32, i32
  }
  func.func @transform_6(%arg0: i32, %arg1: i32) -> (i32, i32) {
    %c0_i32 = arith.constant 0 : i32
    %c0_i32_0 = arith.constant 0 : i32
    %c0_i32_1 = arith.constant 0 : i32
    return %c0_i32, %c0_i32_0 : i32, i32
  }
  func.func @transform_7(%arg0: i32, %arg1: i32) -> (i32, i32) {
    %c0_i32 = arith.constant 0 : i32
    %c0_i32_0 = arith.constant 0 : i32
    return %arg0, %c0_i32 : i32, i32
  }
}

</mosaic_0001>

<llo_original>
// kernel: tpu_custom_call.1
$region0: #{tpu_custom_call.1}
  #allocation0 [shape = 'u32[]', space=smem, size = 0x4, offset = 0x4, fixed_abs, tag = 'smem constant byte address 0x4 - core index']
  #allocation1 [shape = 'u32[144,128]{1,0:T(1,128)}', space=vmem, size = 0x12000, scoped, tag = 'internal scratch']
  %s0 = inlined_call_operand.vmem [shape: f32[1,8,128], index: 0, kind: input, shape index: {}]
  %s1 = inlined_call_operand.hbm [shape: f32[8,128], index: 1, kind: input, shape index: {}, may-alias: {1,7}]
  %s2 = inlined_call_operand.vmem [shape: s32[1,8,1], index: 2, kind: input, shape index: {}]
  %s3 = inlined_call_operand.hbm [shape: f32[128,384], index: 3, kind: input, shape index: {}]
  %s4 = inlined_call_operand.hbm [shape: f32[128,384], index: 4, kind: input, shape index: {}]
  %s5 = inlined_call_operand.vmem [shape: f32[1,384], index: 5, kind: input, shape index: {}]
  %s6 = inlined_call_operand.vmem [shape: f32[1,128], index: 6, kind: input, shape index: {}]
  %s7 = inlined_call_operand.hbm [shape: f32[8,128], index: 7, kind: output, shape index: {}, may-alias: {1,7}]
  %s8 = sld [smem:[#allocation0]]
  $region54: #{tpu_custom_call.1} parent=0
    _
  %s10 = ssub.s32 1, %s8
  %s11 = scalar_select 0, %s10, %s8
  $region1: #{tpu_custom_call.1} parent=0
    #allocation2 [shape = 'u8[4096]{0}', space=vmem, size = 0x1000, scoped, tag = 'input window, operand 1, single buffered']
    #allocation3 [shape = 's32[1]{0}', space=sflag, size = 0x4, scoped, tag = 'scoped memory for tpu_custom_call.1']
    #allocation4 [shape = 's32[1]{0}', space=sflag, size = 0x4, scoped, tag = 'scoped memory for tpu_custom_call.1']
    #allocation5 [shape = 'u8[196608]{0}', space=vmem, size = 0x30000, scoped, tag = 'input window, operand 3, single buffered']
    #allocation6 [shape = 's32[1]{0}', space=sflag, size = 0x4, scoped, tag = 'scoped memory for tpu_custom_call.1']
    #allocation7 [shape = 'u8[196608]{0}', space=vmem, size = 0x30000, scoped, tag = 'input window, operand 4, single buffered']
    #allocation8 [shape = 'u8[4096]{0}', space=vmem, size = 0x1000, scoped, tag = 'output window, operand 0, single buffered']
    %12 = vsyncpa [#allocation3], 0
    %13 = vsyncpa [#allocation6], 0
    %14 = vsyncpa [#allocation4], 0
    // Predicated region
    $region2: #{tpu_custom_call.1} parent=1 // pred_check
      _
    $region3: #{tpu_custom_call.1} parent=1 // pred_check_branch
      %16 = sbr.rel (0) target = $region5
    $region4: #{tpu_custom_call.1} parent=1 // pred_region
      _
    $region5: #{tpu_custom_call.1} parent=1 // pred_fallthru
      _
    // Predicated region
    $region6: #{tpu_custom_call.1} parent=1 // pred_check
      _
    $region7: #{tpu_custom_call.1} parent=1 // pred_check_branch
      %18 = sbr.rel (0) target = $region9
    $region8: #{tpu_custom_call.1} parent=1 // pred_region
      %s20 = ssub.s32 128, 128
      %21 = vsyncadd [#allocation3], %s20
      %s23 = sshll.u32 [#allocation2], 4
      %s24 = int_to_ptr.vmem [resolvable:$true] %s23
      %26 = dma.hbm_to_vmem [thread:$0]  %s1, 128, %s24, [#allocation3]
    $region9: #{tpu_custom_call.1} parent=1 // pred_fallthru
      _
    // Predicated region
    $region10: #{tpu_custom_call.1} parent=1 // pred_check
      _
    $region11: #{tpu_custom_call.1} parent=1 // pred_check_branch
      %28 = sbr.rel (0) target = $region13
    $region12: #{tpu_custom_call.1} parent=1 // pred_region
      _
    $region13: #{tpu_custom_call.1} parent=1 // pred_fallthru
      _
    // Predicated region
    $region14: #{tpu_custom_call.1} parent=1 // pred_check
      _
    $region15: #{tpu_custom_call.1} parent=1 // pred_check_branch
      %30 = sbr.rel (0) target = $region17
    $region16: #{tpu_custom_call.1} parent=1 // pred_region
      %s32 = ssub.s32 6144, 6144
      %33 = vsyncadd [#allocation6], %s32
      %s34 = sshll.u32 [#allocation5], 4
      %s35 = int_to_ptr.vmem [resolvable:$true] %s34
      %40 = dma.hbm_to_vmem [thread:$0]  %s3, 6144, %s35, [#allocation6], 384, 384, 24
    $region17: #{tpu_custom_call.1} parent=1 // pred_fallthru
      _
    // Predicated region
    $region18: #{tpu_custom_call.1} parent=1 // pred_check
      _
    $region19: #{tpu_custom_call.1} parent=1 // pred_check_branch
      %42 = sbr.rel (0) target = $region21
    $region20: #{tpu_custom_call.1} parent=1 // pred_region
      %s44 = ssub.s32 6144, 6144
      %45 = vsyncadd [#allocation6], %s44
      %s46 = sshll.u32 [#allocation7], 4
      %s47 = int_to_ptr.vmem [resolvable:$true] %s46
      %52 = dma.hbm_to_vmem [thread:$0]  %s4, 6144, %s47, [#allocation6], 384, 384, 24
    $region21: #{tpu_custom_call.1} parent=1 // pred_fallthru
      _
    // Predicated region
    $region22: #{tpu_custom_call.1} parent=1 // pred_check
      _
    $region23: #{tpu_custom_call.1} parent=1 // pred_check_branch
      %54 = sbr.rel (0) target = $region25
    $region24: #{tpu_custom_call.1} parent=1 // pred_region
      _
    $region25: #{tpu_custom_call.1} parent=1 // pred_fallthru
      _
    // Predicated region
    $region26: #{tpu_custom_call.1} parent=1 // pred_check
      _
    $region27: #{tpu_custom_call.1} parent=1 // pred_check_branch
      %56 = sbr.rel (0) target = $region29
    $region28: #{tpu_custom_call.1} parent=1 // pred_region
      _
    $region29: #{tpu_custom_call.1} parent=1 // pred_fallthru
      _
    // Predicated region
    $region30: #{tpu_custom_call.1} parent=1 // pred_check
      _
    $region31: #{tpu_custom_call.1} parent=1 // pred_check_branch
      %58 = sbr.rel (0) target = $region33
    $region32: #{tpu_custom_call.1} parent=1 // pred_region
      %59 = dma.done [#allocation3], 128
    $region33: #{tpu_custom_call.1} parent=1 // pred_fallthru
      _
    // Predicated region
    $region34: #{tpu_custom_call.1} parent=1 // pred_check
      _
    $region35: #{tpu_custom_call.1} parent=1 // pred_check_branch
      %61 = sbr.rel (0) target = $region37
    $region36: #{tpu_custom_call.1} parent=1 // pred_region
      %62 = dma.done [#allocation6], 6144
    $region37: #{tpu_custom_call.1} parent=1 // pred_fallthru
      _
    // Predicated region
    $region38: #{tpu_custom_call.1} parent=1 // pred_check
      _
    $region39: #{tpu_custom_call.1} parent=1 // pred_check_branch
      %64 = sbr.rel (0) target = $region41
    $region40: #{tpu_custom_call.1} parent=1 // pred_region
      %65 = dma.done [#allocation6], 6144
    $region41: #{tpu_custom_call.1} parent=1 // pred_fallthru
      _
    %p66 = scmp.eq.s32.totalorder 0, 0
    // Predicated region
    $region42: #{tpu_custom_call.1} parent=1 // pred_check
      %p67 = pneg %p66
    $region43: #{tpu_custom_call.1} parent=1 // pred_check_branch
      %69 = sbr.rel (%p67) target = $region45
    $region44: #{tpu_custom_call.1} parent=1 // pred_region
      %v70 = vld [vmem:[#allocation2] sm:$0xff]
      %71 = vst [vmem:[#allocation8] sm:$0xff] %v70
    $region45: #{tpu_custom_call.1} parent=1 // pred_fallthru
      _
    %v72 = vld [vmem:[%s0] sm:$0xff]
    %v73 = vld [vmem:[#allocation8] sm:$0xff]
    %v74 = vld [vmem:[%s2] sm:$0xff]
    %vm75 = vcmp.ne.s32.totalorder %v74, 0
    %v76 = vld [vmem:[#allocation5] sm:$0xff]
    %v77 = vld [vmem:[#allocation5 + $0x8] sm:$0xff]
    %v78 = vld [vmem:[#allocation5 + $0x10] sm:$0xff]
    %v79 = vld [vmem:[#allocation5 + $0x18] sm:$0xff]
    %v80 = vld [vmem:[#allocation5 + $0x20] sm:$0xff]
    %v81 = vld [vmem:[#allocation5 + $0x28] sm:$0xff]
    %v82 = vld [vmem:[#allocation5 + $0x30] sm:$0xff]
    %v83 = vld [vmem:[#allocation5 + $0x38] sm:$0xff]
    %v84 = vld [vmem:[#allocation5 + $0x40] sm:$0xff]
    %v85 = vld [vmem:[#allocation5 + $0x48] sm:$0xff]
    %v86 = vld [vmem:[#allocation5 + $0x50] sm:$0xff]
    %v87 = vld [vmem:[#allocation5 + $0x58] sm:$0xff]
    %v88 = vld [vmem:[#allocation5 + $0x60] sm:$0xff]
    %v89 = vld [vmem:[#allocation5 + $0x68] sm:$0xff]
    %v90 = vld [vmem:[#allocation5 + $0x70] sm:$0xff]
    %v91 = vld [vmem:[#allocation5 + $0x78] sm:$0xff]
    %v92 = vld [vmem:[#allocation5 + $0x80] sm:$0xff]
    %v93 = vld [vmem:[#allocation5 + $0x88] sm:$0xff]
    %v94 = vld [vmem:[#allocation5 + $0x90] sm:$0xff]
    %v95 = vld [vmem:[#allocation5 + $0x98] sm:$0xff]
    %v96 = vld [vmem:[#allocation5 + $0xa0] sm:$0xff]
    %v97 = vld [vmem:[#allocation5 + $0xa8] sm:$0xff]
    %v98 = vld [vmem:[#allocation5 + $0xb0] sm:$0xff]
    %v99 = vld [vmem:[#allocation5 + $0xb8] sm:$0xff]
    %v100 = vld [vmem:[#allocation5 + $0xc0] sm:$0xff]
    %v101 = vld [vmem:[#allocation5 + $0xc8] sm:$0xff]
    %v102 = vld [vmem:[#allocation5 + $0xd0] sm:$0xff]
    %v103 = vld [vmem:[#allocation5 + $0xd8] sm:$0xff]
    %v104 = vld [vmem:[#allocation5 + $0xe0] sm:$0xff]
    %v105 = vld [vmem:[#allocation5 + $0xe8] sm:$0xff]
    %v106 = vld [vmem:[#allocation5 + $0xf0] sm:$0xff]
    %v107 = vld [vmem:[#allocation5 + $0xf8] sm:$0xff]
    %v108 = vld [vmem:[#allocation5 + $0x100] sm:$0xff]
    %v109 = vld [vmem:[#allocation5 + $0x108] sm:$0xff]
    %v110 = vld [vmem:[#allocation5 + $0x110] sm:$0xff]
    %v111 = vld [vmem:[#allocation5 + $0x118] sm:$0xff]
    %v112 = vld [vmem:[#allocation5 + $0x120] sm:$0xff]
    %v113 = vld [vmem:[#allocation5 + $0x128] sm:$0xff]
    %v114 = vld [vmem:[#allocation5 + $0x130] sm:$0xff]
    %v115 = vld [vmem:[#allocation5 + $0x138] sm:$0xff]
    %v116 = vld [vmem:[#allocation5 + $0x140] sm:$0xff]
    %v117 = vld [vmem:[#allocation5 + $0x148] sm:$0xff]
    %v118 = vld [vmem:[#allocation5 + $0x150] sm:$0xff]
    %v119 = vld [vmem:[#allocation5 + $0x158] sm:$0xff]
    %v120 = vld [vmem:[#allocation5 + $0x160] sm:$0xff]
    %v121 = vld [vmem:[#allocation5 + $0x168] sm:$0xff]
    %v122 = vld [vmem:[#allocation5 + $0x170] sm:$0xff]
    %v123 = vld [vmem:[#allocation5 + $0x178] sm:$0xff]
    %v124 = vld [vmem:[#allocation7] sm:$0xff]
    %v125 = vld [vmem:[#allocation7 + $0x8] sm:$0xff]
    %v126 = vld [vmem:[#allocation7 + $0x10] sm:$0xff]
    %v127 = vld [vmem:[#allocation7 + $0x18] sm:$0xff]
    %v128 = vld [vmem:[#allocation7 + $0x20] sm:$0xff]
    %v129 = vld [vmem:[#allocation7 + $0x28] sm:$0xff]
    %v130 = vld [vmem:[#allocation7 + $0x30] sm:$0xff]
    %v131 = vld [vmem:[#allocation7 + $0x38] sm:$0xff]
    %v132 = vld [vmem:[#allocation7 + $0x40] sm:$0xff]
    %v133 = vld [vmem:[#allocation7 + $0x48] sm:$0xff]
    %v134 = vld [vmem:[#allocation7 + $0x50] sm:$0xff]
    %v135 = vld [vmem:[#allocation7 + $0x58] sm:$0xff]
    %v136 = vld [vmem:[#allocation7 + $0x60] sm:$0xff]
    %v137 = vld [vmem:[#allocation7 + $0x68] sm:$0xff]
    %v138 = vld [vmem:[#allocation7 + $0x70] sm:$0xff]
    %v139 = vld [vmem:[#allocation7 + $0x78] sm:$0xff]
    %v140 = vld [vmem:[#allocation7 + $0x80] sm:$0xff]
    %v141 = vld [vmem:[#allocation7 + $0x88] sm:$0xff]
    %v142 = vld [vmem:[#allocation7 + $0x90] sm:$0xff]
    %v143 = vld [vmem:[#allocation7 + $0x98] sm:$0xff]
    %v144 = vld [vmem:[#allocation7 + $0xa0] sm:$0xff]
    %v145 = vld [vmem:[#allocation7 + $0xa8] sm:$0xff]
    %v146 = vld [vmem:[#allocation7 + $0xb0] sm:$0xff]
    %v147 = vld [vmem:[#allocation7 + $0xb8] sm:$0xff]
    %v148 = vld [vmem:[#allocation7 + $0xc0] sm:$0xff]
    %v149 = vld [vmem:[#allocation7 + $0xc8] sm:$0xff]
    %v150 = vld [vmem:[#allocation7 + $0xd0] sm:$0xff]
    %v151 = vld [vmem:[#allocation7 + $0xd8] sm:$0xff]
    %v152 = vld [vmem:[#allocation7 + $0xe0] sm:$0xff]
    %v153 = vld [vmem:[#allocation7 + $0xe8] sm:$0xff]
    %v154 = vld [vmem:[#allocation7 + $0xf0] sm:$0xff]
    %v155 = vld [vmem:[#allocation7 + $0xf8] sm:$0xff]
    %v156 = vld [vmem:[#allocation7 + $0x100] sm:$0xff]
    %v157 = vld [vmem:[#allocation7 + $0x108] sm:$0xff]
    %v158 = vld [vmem:[#allocation7 + $0x110] sm:$0xff]
    %v159 = vld [vmem:[#allocation7 + $0x118] sm:$0xff]
    %v160 = vld [vmem:[#allocation7 + $0x120] sm:$0xff]
    %v161 = vld [vmem:[#allocation7 + $0x128] sm:$0xff]
    %v162 = vld [vmem:[#allocation7 + $0x130] sm:$0xff]
    %v163 = vld [vmem:[#allocation7 + $0x138] sm:$0xff]
    %v164 = vld [vmem:[#allocation7 + $0x140] sm:$0xff]
    %v165 = vld [vmem:[#allocation7 + $0x148] sm:$0xff]
    %v166 = vld [vmem:[#allocation7 + $0x150] sm:$0xff]
    %v167 = vld [vmem:[#allocation7 + $0x158] sm:$0xff]
    %v168 = vld [vmem:[#allocation7 + $0x160] sm:$0xff]
    %v169 = vld [vmem:[#allocation7 + $0x168] sm:$0xff]
    %v170 = vld [vmem:[#allocation7 + $0x170] sm:$0xff]
    %v171 = vld [vmem:[#allocation7 + $0x178] sm:$0xff]
    %172 = vmatprep.subr.mxu0 %v170
    %173 = vmatpush1.msra.mxu0 %v169
    %174 = vmatprep.subr.mxu0 %v167
    %175 = vmatpush1.msra.mxu0 %v166
    %176 = vmatprep.subr.mxu0 %v164
    %177 = vmatpush1.msra.mxu0 %v163
    %178 = vmatprep.subr.mxu0 %v161
    %179 = vmatpush1.msra.mxu0 %v160
    %180 = vmatprep.subr.mxu0 %v158
    %181 = vmatpush1.msra.mxu0 %v157
    %182 = vmatprep.subr.mxu0 %v155
    %183 = vmatpush1.msra.mxu0 %v154
    %184 = vmatprep.subr.mxu0 %v152
    %185 = vmatpush1.msra.mxu0 %v151
    %186 = vmatprep.subr.mxu0 %v149
    %187 = vmatpush1.msra.mxu0 %v148
    %188 = vmatprep.subr.mxu0 %v146
    %189 = vmatpush1.msra.mxu0 %v145
    %190 = vmatprep.subr.mxu0 %v143
    %191 = vmatpush1.msra.mxu0 %v142
    %192 = vmatprep.subr.mxu0 %v140
    %193 = vmatpush1.msra.mxu0 %v139
    %194 = vmatprep.subr.mxu0 %v137
    %195 = vmatpush1.msra.mxu0 %v136
    %196 = vmatprep.subr.mxu0 %v134
    %197 = vmatpush1.msra.mxu0 %v133
    %198 = vmatprep.subr.mxu0 %v131
    %199 = vmatpush1.msra.mxu0 %v130
    %200 = vmatprep.subr.mxu0 %v128
    %201 = vmatpush1.msra.mxu0 %v127
    %202 = vmatprep.subr.mxu0 %v125
    %203 = vmatpush1.msra.mxu0 %v124
    %204 = vmatprep.subr.mxu0 0.0
    %205 = vmatpush2.msra.mxu0 0.0
    %206 = vmatprep.subr.mxu0 0.0
    %207 = vmatpush2.msra.mxu0 0.0
    %208 = vmatprep.subr.mxu0 0.0
    %209 = vmatpush2.msra.mxu0 0.0
    %210 = vmatprep.subr.mxu0 0.0
    %211 = vmatpush2.msra.mxu0 0.0
    %212 = vmatprep.subr.mxu0 0.0
    %213 = vmatpush2.msra.mxu0 0.0
    %214 = vmatprep.subr.mxu0 0.0
    %215 = vmatpush2.msra.mxu0 0.0
    %216 = vmatprep.subr.mxu0 0.0
    %217 = vmatpush2.msra.mxu0 0.0
    %218 = vmatprep.subr.mxu0 0.0
    %219 = vmatpush2.msra.mxu0 0.0
    %220 = vmatprep.subr.mxu0 0.0
    %221 = vmatpush2.msra.mxu0 0.0
    %222 = vmatprep.subr.mxu0 0.0
    %223 = vmatpush2.msra.mxu0 0.0
    %224 = vmatprep.subr.mxu0 0.0
    %225 = vmatpush2.msra.mxu0 0.0
    %226 = vmatprep.subr.mxu0 0.0
    %227 = vmatpush2.msra.mxu0 0.0
    %228 = vmatprep.subr.mxu0 0.0
    %229 = vmatpush2.msra.mxu0 0.0
    %230 = vmatprep.subr.mxu0 0.0
    %231 = vmatpush2.msra.mxu0 0.0
    %232 = vmatprep.subr.mxu0 0.0
    %233 = vmatpush2.msra.mxu0 0.0
    %234 = vmatprep.subr.mxu0 0.0
    %235 = vmatpush2.msra.mxu0 0.0
    %236 = vmatprep.mubr.f32.mxu0 0.0
    %237 = vmatmul.mubr.f32.gmra.mxu0 %v73
    %v238 = vpop.f32.mrf.mxu0
    %v239 = vadd.f32 0.0, %v238
    %v240 = vpop.f32.mrf.mxu0
    %v241 = vadd.f32 0.0, %v240
    %242 = vdwg.mxu0
    %243 = vmatprep.subr.mxu0 0.0
    %244 = vmatpush1.msra.mxu0 %v171
    %245 = vmatprep.subr.mxu0 0.0
    %246 = vmatpush1.msra.mxu0 %v168
    %247 = vmatprep.subr.mxu0 0.0
    %248 = vmatpush1.msra.mxu0 %v165
    %249 = vmatprep.subr.mxu0 0.0
    %250 = vmatpush1.msra.mxu0 %v162
    %251 = vmatprep.subr.mxu0 0.0
    %252 = vmatpush1.msra.mxu0 %v159
    %253 = vmatprep.subr.mxu0 0.0
    %254 = vmatpush1.msra.mxu0 %v156
    %255 = vmatprep.subr.mxu0 0.0
    %256 = vmatpush1.msra.mxu0 %v153
    %257 = vmatprep.subr.mxu0 0.0
    %258 = vmatpush1.msra.mxu0 %v150
    %259 = vmatprep.subr.mxu0 0.0
    %260 = vmatpush1.msra.mxu0 %v147
    %261 = vmatprep.subr.mxu0 0.0
    %262 = vmatpush1.msra.mxu0 %v144
    %263 = vmatprep.subr.mxu0 0.0
    %264 = vmatpush1.msra.mxu0 %v141
    %265 = vmatprep.subr.mxu0 0.0
    %266 = vmatpush1.msra.mxu0 %v138
    %267 = vmatprep.subr.mxu0 0.0
    %268 = vmatpush1.msra.mxu0 %v135
    %269 = vmatprep.subr.mxu0 0.0
    %270 = vmatpush1.msra.mxu0 %v132
    %271 = vmatprep.subr.mxu0 0.0
    %272 = vmatpush1.msra.mxu0 %v129
    %273 = vmatprep.subr.mxu0 0.0
    %274 = vmatpush1.msra.mxu0 %v126
    %275 = vmatprep.subr.mxu0 0.0
    %276 = vmatpush2.msra.mxu0 0.0
    %277 = vmatprep.subr.mxu0 0.0
    %278 = vmatpush2.msra.mxu0 0.0
    %279 = vmatprep.subr.mxu0 0.0
    %280 = vmatpush2.msra.mxu0 0.0
    %281 = vmatprep.subr.mxu0 0.0
    %282 = vmatpush2.msra.mxu0 0.0
    %283 = vmatprep.subr.mxu0 0.0
    %284 = vmatpush2.msra.mxu0 0.0
    %285 = vmatprep.subr.mxu0 0.0
    %286 = vmatpush2.msra.mxu0 0.0
    %287 = vmatprep.subr.mxu0 0.0
    %288 = vmatpush2.msra.mxu0 0.0
    %289 = vmatprep.subr.mxu0 0.0
    %290 = vmatpush2.msra.mxu0 0.0
    %291 = vmatprep.subr.mxu0 0.0
    %292 = vmatpush2.msra.mxu0 0.0
    %293 = vmatprep.subr.mxu0 0.0
    %294 = vmatpush2.msra.mxu0 0.0
    %295 = vmatprep.subr.mxu0 0.0
    %296 = vmatpush2.msra.mxu0 0.0
    %297 = vmatprep.subr.mxu0 0.0
    %298 = vmatpush2.msra.mxu0 0.0
    %299 = vmatprep.subr.mxu0 0.0
    %300 = vmatpush2.msra.mxu0 0.0
    %301 = vmatprep.subr.mxu0 0.0
    %302 = vmatpush2.msra.mxu0 0.0
    %303 = vmatprep.subr.mxu0 0.0
    %304 = vmatpush2.msra.mxu0 0.0
    %305 = vmatprep.subr.mxu0 0.0
    %306 = vmatpush2.msra.mxu0 0.0
    %307 = vmatprep.mubr.f32.mxu0 0.0
    %308 = vmatmul.mubr.f32.gmra.mxu0 %v73
    %v309 = vpop.f32.mrf.mxu0
    %v310 = vadd.f32 0.0, %v309
    %v311 = vpop.f32.mrf.mxu0
    %312 = vdwg.mxu0
    %v313 = vld [vmem:[%s5] sm:$0x7]
    %v315 = vlaneseq
    %v316 = vshrl.u32 %v315, 7
    %v317 = vsub.s32 0, %v316
    %v318 = vrot.slane %v313, %v317
    %v319 = vlaneseq
    %v320 = vshrl.u32 %v319, 7
    %v321 = vsub.s32 1, %v320
    %v322 = vrot.slane %v313, %v321
    %v323 = vlaneseq
    %v324 = vshrl.u32 %v323, 7
    %v325 = vsub.s32 2, %v324
    %v326 = vrot.slane %v313, %v325
    %330 = vmatprep.subr.mxu0 %v122
    %331 = vmatpush1.msra.mxu0 %v121
    %332 = vmatprep.subr.mxu0 %v119
    %333 = vmatpush1.msra.mxu0 %v118
    %334 = vmatprep.subr.mxu0 %v116
    %335 = vmatpush1.msra.mxu0 %v115
    %336 = vmatprep.subr.mxu0 %v113
    %337 = vmatpush1.msra.mxu0 %v112
    %338 = vmatprep.subr.mxu0 %v110
    %339 = vmatpush1.msra.mxu0 %v109
    %340 = vmatprep.subr.mxu0 %v107
    %341 = vmatpush1.msra.mxu0 %v106
    %342 = vmatprep.subr.mxu0 %v104
    %343 = vmatpush1.msra.mxu0 %v103
    %344 = vmatprep.subr.mxu0 %v101
    %345 = vmatpush1.msra.mxu0 %v100
    %346 = vmatprep.subr.mxu0 %v98
    %347 = vmatpush1.msra.mxu0 %v97
    %348 = vmatprep.subr.mxu0 %v95
    %349 = vmatpush1.msra.mxu0 %v94
    %350 = vmatprep.subr.mxu0 %v92
    %351 = vmatpush1.msra.mxu0 %v91
    %352 = vmatprep.subr.mxu0 %v89
    %353 = vmatpush1.msra.mxu0 %v88
    %354 = vmatprep.subr.mxu0 %v86
    %355 = vmatpush1.msra.mxu0 %v85
    %356 = vmatprep.subr.mxu0 %v83
    %357 = vmatpush1.msra.mxu0 %v82
    %358 = vmatprep.subr.mxu0 %v80
    %359 = vmatpush1.msra.mxu0 %v79
    %360 = vmatprep.subr.mxu0 %v77
    %361 = vmatpush1.msra.mxu0 %v76
    %362 = vmatprep.subr.mxu0 0.0
    %363 = vmatpush2.msra.mxu0 0.0
    %364 = vmatprep.subr.mxu0 0.0
    %365 = vmatpush2.msra.mxu0 0.0
    %366 = vmatprep.subr.mxu0 0.0
    %367 = vmatpush2.msra.mxu0 0.0
    %368 = vmatprep.subr.mxu0 0.0
    %369 = vmatpush2.msra.mxu0 0.0
    %370 = vmatprep.subr.mxu0 0.0
    %371 = vmatpush2.msra.mxu0 0.0
    %372 = vmatprep.subr.mxu0 0.0
    %373 = vmatpush2.msra.mxu0 0.0
    %374 = vmatprep.subr.mxu0 0.0
    %375 = vmatpush2.msra.mxu0 0.0
    %376 = vmatprep.subr.mxu0 0.0
    %377 = vmatpush2.msra.mxu0 0.0
    %378 = vmatprep.subr.mxu0 0.0
    %379 = vmatpush2.msra.mxu0 0.0
    %380 = vmatprep.subr.mxu0 0.0
    %381 = vmatpush2.msra.mxu0 0.0
    %382 = vmatprep.subr.mxu0 0.0
    %383 = vmatpush2.msra.mxu0 0.0
    %384 = vmatprep.subr.mxu0 0.0
    %385 = vmatpush2.msra.mxu0 0.0
    %386 = vmatprep.subr.mxu0 0.0
    %387 = vmatpush2.msra.mxu0 0.0
    %388 = vmatprep.subr.mxu0 0.0
    %389 = vmatpush2.msra.mxu0 0.0
    %390 = vmatprep.subr.mxu0 0.0
    %391 = vmatpush2.msra.mxu0 0.0
    %392 = vmatprep.subr.mxu0 0.0
    %393 = vmatpush2.msra.mxu0 0.0
    %394 = vmatprep.mubr.f32.mxu0 0.0
    %395 = vmatmul.mubr.f32.gmra.mxu0 %v72
    %v396 = vpop.f32.mrf.mxu0
    %v397 = vadd.f32 %v318, %v396
    %v398 = vpop.f32.mrf.mxu0
    %v399 = vadd.f32 %v322, %v398
    %400 = vdwg.mxu0
    %401 = vmatprep.subr.mxu0 0.0
    %402 = vmatpush1.msra.mxu0 %v123
    %403 = vmatprep.subr.mxu0 0.0
    %404 = vmatpush1.msra.mxu0 %v120
    %405 = vmatprep.subr.mxu0 0.0
    %406 = vmatpush1.msra.mxu0 %v117
    %407 = vmatprep.subr.mxu0 0.0
    %408 = vmatpush1.msra.mxu0 %v114
    %409 = vmatprep.subr.mxu0 0.0
    %410 = vmatpush1.msra.mxu0 %v111
    %411 = vmatprep.subr.mxu0 0.0
    %412 = vmatpush1.msra.mxu0 %v108
    %413 = vmatprep.subr.mxu0 0.0
    %414 = vmatpush1.msra.mxu0 %v105
    %415 = vmatprep.subr.mxu0 0.0
    %416 = vmatpush1.msra.mxu0 %v102
    %417 = vmatprep.subr.mxu0 0.0
    %418 = vmatpush1.msra.mxu0 %v99
    %419 = vmatprep.subr.mxu0 0.0
    %420 = vmatpush1.msra.mxu0 %v96
    %421 = vmatprep.subr.mxu0 0.0
    %422 = vmatpush1.msra.mxu0 %v93
    %423 = vmatprep.subr.mxu0 0.0
    %424 = vmatpush1.msra.mxu0 %v90
    %425 = vmatprep.subr.mxu0 0.0
    %426 = vmatpush1.msra.mxu0 %v87
    %427 = vmatprep.subr.mxu0 0.0
    %428 = vmatpush1.msra.mxu0 %v84
    %429 = vmatprep.subr.mxu0 0.0
    %430 = vmatpush1.msra.mxu0 %v81
    %431 = vmatprep.subr.mxu0 0.0
    %432 = vmatpush1.msra.mxu0 %v78
    %433 = vmatprep.subr.mxu0 0.0
    %434 = vmatpush2.msra.mxu0 0.0
    %435 = vmatprep.subr.mxu0 0.0
    %436 = vmatpush2.msra.mxu0 0.0
    %437 = vmatprep.subr.mxu0 0.0
    %438 = vmatpush2.msra.mxu0 0.0
    %439 = vmatprep.subr.mxu0 0.0
    %440 = vmatpush2.msra.mxu0 0.0
    %441 = vmatprep.subr.mxu0 0.0
    %442 = vmatpush2.msra.mxu0 0.0
    %443 = vmatprep.subr.mxu0 0.0
    %444 = vmatpush2.msra.mxu0 0.0
    %445 = vmatprep.subr.mxu0 0.0
    %446 = vmatpush2.msra.mxu0 0.0
    %447 = vmatprep.subr.mxu0 0.0
    %448 = vmatpush2.msra.mxu0 0.0
    %449 = vmatprep.subr.mxu0 0.0
    %450 = vmatpush2.msra.mxu0 0.0
    %451 = vmatprep.subr.mxu0 0.0
    %452 = vmatpush2.msra.mxu0 0.0
    %453 = vmatprep.subr.mxu0 0.0
    %454 = vmatpush2.msra.mxu0 0.0
    %455 = vmatprep.subr.mxu0 0.0
    %456 = vmatpush2.msra.mxu0 0.0
    %457 = vmatprep.subr.mxu0 0.0
    %458 = vmatpush2.msra.mxu0 0.0
    %459 = vmatprep.subr.mxu0 0.0
    %460 = vmatpush2.msra.mxu0 0.0
    %461 = vmatprep.subr.mxu0 0.0
    %462 = vmatpush2.msra.mxu0 0.0
    %463 = vmatprep.subr.mxu0 0.0
    %464 = vmatpush2.msra.mxu0 0.0
    %465 = vmatprep.mubr.f32.mxu0 0.0
    %466 = vmatmul.mubr.f32.gmra.mxu0 %v72
    %v467 = vpop.f32.mrf.mxu0
    %v468 = vadd.f32 %v326, %v467
    %v469 = vpop.f32.mrf.mxu0
    %470 = vdwg.mxu0
    %v471 = vadd.f32 %v397, %v239
    %v472 = vxor.u32 %v471, 2147483648
    %v473 = vmul.f32 %v472, 1.442695
    %v474 = vpow.pop %v473
    %v475 = vadd.f32 %v474, 1.0
    %v476 = vrcp.pop %v475
    %v477 = vmul.f32 1.0, %v476
    %v478 = vadd.f32 %v399, %v241
    %v479 = vxor.u32 %v478, 2147483648
    %v480 = vmul.f32 %v479, 1.442695
    %v481 = vpow.pop %v480
    %v482 = vadd.f32 %v481, 1.0
    %v483 = vrcp.pop %v482
    %v484 = vmul.f32 1.0, %v483
    %v485 = vld [vmem:[%s6] sm:$0x1]
    %v487 = vlaneseq
    %v488 = vshrl.u32 %v487, 7
    %v489 = vsub.s32 0, %v488
    %v490 = vrot.slane %v485, %v489
    %v492 = vadd.f32 %v310, %v490
    %v493 = vmul.f32 %v477, %v492
    %v494 = vadd.f32 %v468, %v493
    %v495 = vtanh.pop %v494
    %v496 = vsub.f32 %v73, %v495
    %v497 = vmul.f32 %v484, %v496
    %v498 = vadd.f32 %v495, %v497
    %v499 = vsel %vm75, 1, 0
    %500 = vset.pattern.permute.xlu0 0
    %501 = vperm.xlu0 %500, %v499
    %v502 = vpop.permute.xlu0 %501
    %vm503 = vcmp.eq.s32.totalorder %v502, 1
    %v504 = vsel %vm503, %v73, %v498
    %505 = vst [vmem:[#allocation8] sm:$0xff] %v504
    // Predicated region
    $region46: #{tpu_custom_call.1} parent=1 // pred_check
      _
    $region47: #{tpu_custom_call.1} parent=1 // pred_check_branch
      %507 = sbr.rel (0) target = $region49
    $region48: #{tpu_custom_call.1} parent=1 // pred_region
      %s509 = ssub.s32 128, 128
      %510 = vsyncadd [#allocation4], %s509
      %s512 = sshll.u32 [#allocation8], 4
      %s513 = int_to_ptr.vmem [resolvable:$true] %s512
      %515 = dma.vmem_to_hbm [thread:$0]  %s513, 128, %s7, [#allocation4]
    $region49: #{tpu_custom_call.1} parent=1 // pred_fallthru
      _
    // Predicated region
    $region50: #{tpu_custom_call.1} parent=1 // pred_check
      _
    $region51: #{tpu_custom_call.1} parent=1 // pred_check_branch
      %517 = sbr.rel (0) target = $region53
    $region52: #{tpu_custom_call.1} parent=1 // pred_region
      %518 = dma.done [#allocation4], 128
    $region53: #{tpu_custom_call.1} parent=1 // pred_fallthru
      _
    %519 = vsyncpa [#allocation3], 1
    %520 = vsyncpa [#allocation6], 1
    %521 = vsyncpa [#allocation4], 1

</llo_original>
